<compile_context>
chip_gen: v7x
topology: tpu7x:2x2x1
jax: 0.10.0
libtpu: 0.0.40
codegen_flags: <defaults>
</compile_context>

<pallas_src>
import jax
import jax.numpy as jnp
from jax.experimental import pallas as pl
from jax.experimental.pallas import tpu as pltpu


def fold_norm_params(weight_t, bias, mean, std):
    """Fold (x - mean) / std into the linear layer.  Call ONCE when parameters
    are loaded (mean/std/W are registered buffers), never per forward:

        ((x - mean)/std) @ W + b  ==  x @ (W * (1/std)[:, None]) + (b - (mean/std) @ W)

    Folding is done in f32 (even if the compute dtype will be bf16) to avoid
    bias drift.
    """
    w = weight_t.astype(jnp.float32)               # [D, C]
    b = bias.reshape(1, -1).astype(jnp.float32)    # [1, C]
    inv_std = 1.0 / std.reshape(-1).astype(jnp.float32)
    mean_v = mean.reshape(-1).astype(jnp.float32)
    w_eff = w * inv_std[:, None]
    b_eff = b - (mean_v * inv_std)[None, :] @ w
    return w_eff, b_eff


def _linear_bias_kernel(x_ref, w_ref, b_ref, o_ref):
    # Single MXU pass over the full contraction dim + f32 bias add, cast on
    # store.  No scratch accumulator, no reduction grid axis, no pl.when.
    o_ref[...] = (
        jnp.dot(x_ref[...], w_ref[...], preferred_element_type=jnp.float32)
        + b_ref[...]
    ).astype(o_ref.dtype)


def linear_classifier_forward(emb, w_eff, b_eff, *, compute_dtype=None,
                              out_dtype=None, tm_max=512):
    """Pallas forward of LinearClassifier.forward (post-fold).

    emb:    [B, D]  activations
    w_eff:  [D, C]  (folded) weight, transposed nn.Linear layout
    b_eff:  [C] or [1, C]  (folded) bias
    compute_dtype: e.g. jnp.bfloat16 on v6e/v7x (f32 accumulation kept).
    returns [B, C] in out_dtype (defaults to emb.dtype).
    """
    B, D = emb.shape
    C = w_eff.shape[1]
    if out_dtype is None:
        out_dtype = emb.dtype

    if compute_dtype is not None:
        emb = emb.astype(compute_dtype)
        w_eff = w_eff.astype(compute_dtype)
    b_eff = b_eff.reshape(1, C).astype(jnp.float32)  # bias add stays f32

    # B is the only tiled axis.  Small B -> one block equal to the full dim
    # (no padding, no alignment requirement).  Large B -> tm_max-row blocks
    # (multiple of 8); Pallas handles a partial trailing block (OOB writes
    # are discarded), and "parallel" lets v7x's two TCs split the blocks.
    tm = B if B <= tm_max else tm_max
    grid = (pl.cdiv(B, tm),)

    cost = pl.CostEstimate(
        flops=2 * B * D * C,
        transcendentals=0,
        bytes_accessed=(
            emb.size * emb.dtype.itemsize
            + w_eff.size * w_eff.dtype.itemsize
            + b_eff.size * 4
            + B * C * jnp.dtype(out_dtype).itemsize
        ),
    )

    return pl.pallas_call(
        _linear_bias_kernel,
        out_shape=jax.ShapeDtypeStruct((B, C), out_dtype),
        grid_spec=pltpu.PrefetchScalarGridSpec(
            num_scalar_prefetch=0,
            grid=grid,
            in_specs=[
                pl.BlockSpec((tm, D), lambda i: (i, 0)),   # x tile
                pl.BlockSpec((D, C), lambda i: (0, 0)),    # full W (resident)
                pl.BlockSpec((1, C), lambda i: (0, 0)),    # bias (resident)
            ],
            out_specs=pl.BlockSpec((tm, C), lambda i: (i, 0)),
        ),
        compiler_params=pltpu.CompilerParams(
            dimension_semantics=("parallel",),
        ),
        cost_estimate=cost,
    )(emb, w_eff, b_eff)


if __name__ == "__main__":
    # Shapes consistent with the module:
    #   emb_channels (in_chans) = 32, num_class (out_chans) = 10, batch = 8
    B, D, C = 8, 32, 10

    key = jax.random.PRNGKey(0)
    k_emb, k_w, k_b, k_mean, k_std, k_big = jax.random.split(key, 6)

    emb = jax.random.normal(k_emb, (B, D), dtype=jnp.float32)

    # nn.Linear-style init (uniform(-1/sqrt(D), 1/sqrt(D))), torch layout [out, in]
    bound = 1.0 / jnp.sqrt(jnp.float32(D))
    weight = jax.random.uniform(k_w, (C, D), minval=-bound, maxval=bound)
    bias = jax.random.uniform(k_b, (C,), minval=-bound, maxval=bound)
    weight_t = weight.T  # [D, C]

    # Non-trivial normalization buffers (default init would be mean=0, std=1)
    mean = jax.random.normal(k_mean, (1, D), dtype=jnp.float32) * 0.1
    std = 1.0 + 0.5 * jax.random.uniform(k_std, (1, D), dtype=jnp.float32)

    # ---- forward(emb, is_normalized=False): fold ONCE, then pure matmul+bias
    w_eff, b_eff = fold_norm_params(weight_t, bias, mean, std)
    out = jax.block_until_ready(linear_classifier_forward(emb, w_eff, b_eff))
    ref = ((emb - mean) / std) @ weight_t + bias.reshape(1, C)
    assert out.shape == (B, C) and out.dtype == emb.dtype
    assert jnp.allclose(out, ref, atol=1e-5, rtol=1e-5)

    # ---- forward(emb, is_normalized=True): no fold, raw W / b
    out2 = jax.block_until_ready(
        linear_classifier_forward(emb, weight_t, bias)
    )
    ref2 = emb @ weight_t + bias.reshape(1, C)
    assert jnp.allclose(out2, ref2, atol=1e-5, rtol=1e-5)

    # ---- bf16 compute path (recommended default on v6e/v7x); looser tolerance
    out_bf16 = jax.block_until_ready(
        linear_classifier_forward(emb, w_eff, b_eff,
                                  compute_dtype=jnp.bfloat16,
                                  out_dtype=jnp.float32)
    )
    assert jnp.allclose(out_bf16, ref, atol=5e-2, rtol=5e-2)

    # ---- larger batch: exercises the B-tiled grid (2 blocks -> both v7x TCs)
    Bb = 1024
    emb_big = jax.random.normal(k_big, (Bb, D), dtype=jnp.float32)
    out_big = jax.block_until_ready(
        linear_classifier_forward(emb_big, w_eff, b_eff)
    )
    ref_big = ((emb_big - mean) / std) @ weight_t + bias.reshape(1, C)
    assert out_big.shape == (Bb, C)
    assert jnp.allclose(out_big, ref_big, atol=1e-5, rtol=1e-5)

    print("KERNEL_OK")
</pallas_src>

<mosaic_0001>
module attributes {stable_mosaic.version = 11 : i64} {
  func.func @_linear_bias_kernel(%arg0: i32, %arg1: memref<8x32xf32, #tpu.memory_space<vmem>>, %arg2: memref<32x10xf32, #tpu.memory_space<vmem>>, %arg3: memref<1x10xf32, #tpu.memory_space<vmem>>, %arg4: memref<8x10xf32, #tpu.memory_space<vmem>>) attributes {dimension_semantics = [#tpu.dimension_semantics<parallel>], iteration_bounds = array<i64: 1>, scalar_prefetch = 0 : i64, scratch_operands = 0 : i64, tpu.core_type = #tpu.core_type<tc>, window_params = [{transform_indices = @transform_0, window_bounds = array<i64: 8, 32>}, {pipeline_mode = #tpu.pipeline_mode<synchronous>, transform_indices = @transform_1, window_bounds = array<i64: 32, 10>}, {pipeline_mode = #tpu.pipeline_mode<synchronous>, transform_indices = @transform_2, window_bounds = array<i64: 1, 10>}, {transform_indices = @transform_3, window_bounds = array<i64: 8, 10>}]} {
    %c0 = arith.constant 0 : index
    %c0_0 = arith.constant 0 : index
    %0 = vector.load %arg1[%c0, %c0_0] : memref<8x32xf32, #tpu.memory_space<vmem>>, vector<8x32xf32>
    %c0_1 = arith.constant 0 : index
    %c0_2 = arith.constant 0 : index
    %1 = vector.load %arg2[%c0_1, %c0_2] : memref<32x10xf32, #tpu.memory_space<vmem>>, vector<32x10xf32>
    %cst = arith.constant dense<0.000000e+00> : vector<8x10xf32>
    %2 = tpu.matmul %0, %1, %cst {dimension_numbers = #tpu.dot_dimension_numbers<[1], [0], [0], [1], [0, 0, 1, 1], [], []>} : vector<8x32xf32>, vector<32x10xf32>, vector<8x10xf32> -> vector<8x10xf32>
    %c0_3 = arith.constant 0 : index
    %c0_4 = arith.constant 0 : index
    %3 = vector.load %arg3[%c0_3, %c0_4] : memref<1x10xf32, #tpu.memory_space<vmem>>, vector<1x10xf32>
    %4 = vector.broadcast %3 : vector<1x10xf32> to vector<8x10xf32>
    %5 = arith.addf %2, %4 : vector<8x10xf32>
    %c0_5 = arith.constant 0 : index
    %c0_6 = arith.constant 0 : index
    %6 = vector.load %arg4[%c0_5, %c0_6] : memref<8x10xf32, #tpu.memory_space<vmem>>, vector<8x10xf32>
    tpu.vector_store %arg4[%c0_5, %c0_6], %5 {strides = array<i32>} : memref<8x10xf32, #tpu.memory_space<vmem>>, vector<8x10xf32>,
    return
  }
  func.func @transform_0(%arg0: i32) -> (i32, i32) {
    %c0_i32 = arith.constant 0 : i32
    %c0_i32_0 = arith.constant 0 : i32
    return %arg0, %c0_i32 : i32, i32
  }
  func.func @transform_1(%arg0: i32) -> (i32, i32) {
    %c0_i32 = arith.constant 0 : i32
    %c0_i32_0 = arith.constant 0 : i32
    %c0_i32_1 = arith.constant 0 : i32
    return %c0_i32, %c0_i32_0 : i32, i32
  }
  func.func @transform_2(%arg0: i32) -> (i32, i32) {
    %c0_i32 = arith.constant 0 : i32
    %c0_i32_0 = arith.constant 0 : i32
    %c0_i32_1 = arith.constant 0 : i32
    return %c0_i32, %c0_i32_0 : i32, i32
  }
  func.func @transform_3(%arg0: i32) -> (i32, i32) {
    %c0_i32 = arith.constant 0 : i32
    %c0_i32_0 = arith.constant 0 : i32
    return %arg0, %c0_i32 : i32, i32
  }
}

</mosaic_0001>

<llo_original>
// kernel: tpu_custom_call.1
$region0: #{tpu_custom_call.1}
  #allocation0 [shape = 'u32[]', space=smem, size = 0x4, offset = 0x4, fixed_abs, tag = 'smem constant byte address 0x4 - core index']
  #allocation1 [shape = 'u32[144,128]{1,0:T(1,128)}', space=vmem, size = 0x12000, scoped, tag = 'internal scratch']
  %s0 = inlined_call_operand.vmem [shape: f32[8,32], index: 0, kind: input, shape index: {}]
  %s1 = inlined_call_operand.vmem [shape: f32[32,10], index: 1, kind: input, shape index: {}]
  %s2 = inlined_call_operand.vmem [shape: f32[1,10], index: 2, kind: input, shape index: {}]
  %s3 = inlined_call_operand.hbm [shape: f32[8,10], index: 3, kind: output, shape index: {}]
  %s4 = sld [smem:[#allocation0]]
  $region22: #{tpu_custom_call.1} parent=0
    _
  %s6 = ssub.s32 1, %s4
  %s7 = scalar_select 0, %s6, %s4
  $region1: #{tpu_custom_call.1} parent=0
    #allocation2 [shape = 'u8[4096]{0}', space=vmem, size = 0x1000, scoped, tag = 'output window, operand 0, single buffered']
    #allocation3 [shape = 's32[1]{0}', space=sflag, size = 0x4, scoped, tag = 'scoped memory for tpu_custom_call.1']
    %8 = vsyncpa [#allocation3], 0
    // Predicated region
    $region2: #{tpu_custom_call.1} parent=1 // pred_check
      _
    $region3: #{tpu_custom_call.1} parent=1 // pred_check_branch
      %10 = sbr.rel (0) target = $region5
    $region4: #{tpu_custom_call.1} parent=1 // pred_region
      _
    $region5: #{tpu_custom_call.1} parent=1 // pred_fallthru
      _
    // Predicated region
    $region6: #{tpu_custom_call.1} parent=1 // pred_check
      _
    $region7: #{tpu_custom_call.1} parent=1 // pred_check_branch
      %12 = sbr.rel (0) target = $region9
    $region8: #{tpu_custom_call.1} parent=1 // pred_region
      _
    $region9: #{tpu_custom_call.1} parent=1 // pred_fallthru
      _
    // Predicated region
    $region10: #{tpu_custom_call.1} parent=1 // pred_check
      _
    $region11: #{tpu_custom_call.1} parent=1 // pred_check_branch
      %14 = sbr.rel (0) target = $region13
    $region12: #{tpu_custom_call.1} parent=1 // pred_region
      _
    $region13: #{tpu_custom_call.1} parent=1 // pred_fallthru
      _
    %v15 = vld [vmem:[%s0] sm:$0xff]
    %v16 = vld [vmem:[%s1] sm:$0xff]
    %v17 = vld [vmem:[%s1 + $0x8] sm:$0xff]
    %v18 = vld [vmem:[%s1 + $0x10] sm:$0xff]
    %v19 = vld [vmem:[%s1 + $0x18] sm:$0xff]
    %v20 = vld [vmem:[%s2] sm:$0x1]
    %v22 = vlaneseq
    %v23 = vshrl.u32 %v22, 7
    %v24 = vsub.s32 0, %v23
    %v25 = vrot.slane %v20, %v24
    %vm27 = vcmask 261120
    %v29 = vsel %vm27, %v15, 0
    %31 = vmatprep.subr.mxu0 0.0
    %32 = vmatpush1.msra.mxu0 %v16
    %33 = vmatprep.subr.mxu0 0.0
    %34 = vmatpush1.msra.mxu0 %v17
    %35 = vmatprep.subr.mxu0 0.0
    %36 = vmatpush1.msra.mxu0 %v18
    %37 = vmatprep.subr.mxu0 0.0
    %38 = vmatpush1.msra.mxu0 %v19
    %39 = vmatprep.subr.mxu0 0.0
    %40 = vmatpush1.msra.mxu0 0.0
    %41 = vmatprep.subr.mxu0 0.0
    %42 = vmatpush1.msra.mxu0 0.0
    %43 = vmatprep.subr.mxu0 0.0
    %44 = vmatpush1.msra.mxu0 0.0
    %45 = vmatprep.subr.mxu0 0.0
    %46 = vmatpush1.msra.mxu0 0.0
    %47 = vmatprep.subr.mxu0 0.0
    %48 = vmatpush1.msra.mxu0 0.0
    %49 = vmatprep.subr.mxu0 0.0
    %50 = vmatpush1.msra.mxu0 0.0
    %51 = vmatprep.subr.mxu0 0.0
    %52 = vmatpush1.msra.mxu0 0.0
    %53 = vmatprep.subr.mxu0 0.0
    %54 = vmatpush1.msra.mxu0 0.0
    %55 = vmatprep.subr.mxu0 0.0
    %56 = vmatpush1.msra.mxu0 0.0
    %57 = vmatprep.subr.mxu0 0.0
    %58 = vmatpush1.msra.mxu0 0.0
    %59 = vmatprep.subr.mxu0 0.0
    %60 = vmatpush1.msra.mxu0 0.0
    %61 = vmatprep.subr.mxu0 0.0
    %62 = vmatpush1.msra.mxu0 0.0
    %63 = vmatprep.subr.mxu0 0.0
    %64 = vmatpush1.msra.mxu0 0.0
    %65 = vmatprep.subr.mxu0 0.0
    %66 = vmatpush1.msra.mxu0 0.0
    %67 = vmatprep.subr.mxu0 0.0
    %68 = vmatpush1.msra.mxu0 0.0
    %69 = vmatprep.subr.mxu0 0.0
    %70 = vmatpush1.msra.mxu0 0.0
    %71 = vmatprep.subr.mxu0 0.0
    %72 = vmatpush1.msra.mxu0 0.0
    %73 = vmatprep.subr.mxu0 0.0
    %74 = vmatpush1.msra.mxu0 0.0
    %75 = vmatprep.subr.mxu0 0.0
    %76 = vmatpush1.msra.mxu0 0.0
    %77 = vmatprep.subr.mxu0 0.0
    %78 = vmatpush1.msra.mxu0 0.0
    %79 = vmatprep.subr.mxu0 0.0
    %80 = vmatpush1.msra.mxu0 0.0
    %81 = vmatprep.subr.mxu0 0.0
    %82 = vmatpush1.msra.mxu0 0.0
    %83 = vmatprep.subr.mxu0 0.0
    %84 = vmatpush1.msra.mxu0 0.0
    %85 = vmatprep.subr.mxu0 0.0
    %86 = vmatpush1.msra.mxu0 0.0
    %87 = vmatprep.subr.mxu0 0.0
    %88 = vmatpush1.msra.mxu0 0.0
    %89 = vmatprep.subr.mxu0 0.0
    %90 = vmatpush1.msra.mxu0 0.0
    %91 = vmatprep.subr.mxu0 0.0
    %92 = vmatpush1.msra.mxu0 0.0
    %93 = vmatprep.subr.mxu0 0.0
    %94 = vmatpush1.msra.mxu0 0.0
    %95 = vmatprep.mubr.f32.mxu0 0.0
    %96 = vmatmul.mubr.f32.gmra.mrb[0].mxu0 %v29
    %v97 = vpop.f32.mrb[0].mxu0
    %v98 = vadd.f32 %v25, %v97
    %v99 = vpop.f32.mrb[0].mxu0
    %100 = vdwg.mxu0
    %vm101 = vcmask 80896
    %102 = vst.msk [vmem:[#allocation2] sm:$0xff] %vm101, %v98
    // Predicated region
    $region14: #{tpu_custom_call.1} parent=1 // pred_check
      _
    $region15: #{tpu_custom_call.1} parent=1 // pred_check_branch
      %104 = sbr.rel (0) target = $region17
    $region16: #{tpu_custom_call.1} parent=1 // pred_region
      %s106 = ssub.s32 128, 128
      %107 = vsyncadd [#allocation3], %s106
      %s109 = sshll.u32 [#allocation2], 4
      %s110 = int_to_ptr.vmem [resolvable:$true] %s109
      %112 = dma.vmem_to_hbm [thread:$0]  %s110, 128, %s3, [#allocation3]
    $region17: #{tpu_custom_call.1} parent=1 // pred_fallthru
      _
    // Predicated region
    $region18: #{tpu_custom_call.1} parent=1 // pred_check
      _
    $region19: #{tpu_custom_call.1} parent=1 // pred_check_branch
      %114 = sbr.rel (0) target = $region21
    $region20: #{tpu_custom_call.1} parent=1 // pred_region
      %115 = dma.done [#allocation3], 128
    $region21: #{tpu_custom_call.1} parent=1 // pred_fallthru
      _
    %116 = vsyncpa [#allocation3], 1

</llo_original>
